<compile_context>
chip_gen: v7x
topology: tpu7x:2x2x1
jax: 0.10.0
libtpu: 0.0.40
codegen_flags: <defaults>
</compile_context>

<pallas_src>
import functools
import math

import jax
import jax.numpy as jnp
import numpy as np
from jax.experimental import pallas as pl
from jax.experimental.pallas import tpu as pltpu

# ---- static "config" (stand-in for CegisConfig) -----------------------------
N_INPUT = 4                                    # config.example.n
B1_HIDDEN = (32, 32, 32, 32)                   # config.b1_hidden
B1_ACT = ("SQUARE", "MUL", "SKIP", "LINEAR")   # config.b1_act (all four branches)

_LANE = 128
_ROW_ALIGN = 16    # bf16 sublane packing: keep every row-block 16-aligned


def _round_up(x, m):
    return ((x + m - 1) // m) * m


def _cdiv(a, b):
    return -(-a // b)


# ---- Pallas kernel ----------------------------------------------------------
#   x_ref  : [n_in_pad, tile_B]  bf16 (features x batch; row n_input == 1.0)
#   pk_ref : [R, C]              bf16 packed weights+biases, VMEM-resident
#   o_ref  : [1, tile_B]         f32
def _net_kernel(layers, head, bias_col, x_ref, pk_ref, o_ref):
    x = x_ref[...]                       # read once; reused by SKIP layers
    y = x
    for act, r0, n_hid, c_y, c_x, add_bias in layers:
        nrows = n_hid if act in ("SQUARE", "LINEAR") else 2 * n_hid
        lhs = y if y.dtype == jnp.bfloat16 else y.astype(jnp.bfloat16)
        z = jnp.dot(pk_ref[r0:r0 + nrows, 0:c_y], lhs,
                    preferred_element_type=jnp.float32)
        if c_x:
            # SKIP: second accumulating matmul against x (no concatenate temp)
            z = z + jnp.dot(pk_ref[r0:r0 + nrows, c_y:c_y + c_x], x,
                            preferred_element_type=jnp.float32)
        if add_bias:
            z = z + pk_ref[r0:r0 + nrows, bias_col:bias_col + 1].astype(jnp.float32)
        if act == "SQUARE":
            y = z * z
        elif act == "LINEAR":
            y = z
        else:  # MUL / SKIP: fused matmul -> split + elementwise multiply
            y = z[:n_hid, :] * z[n_hid:, :]
    r0h, nh = head
    wf = pk_ref[r0h:r0h + nh, 0:1].astype(jnp.float32)
    # bias-free head as VPU multiply + sublane reduce (no N=1 MXU pass)
    o_ref[...] = jnp.sum(y * wf, axis=0, keepdims=True)


# ---- parameter init (PyTorch nn.Linear layout + init) -----------------------
def init_params(key, n_input, hidden, acts):
    """weights: [n_out, n_in], biases: [n_out] — same as torch nn.Linear."""
    layers = []
    n_prev = n_input
    for n_hid, act in zip(hidden, acts):
        key, k1, k2, k3, k4 = jax.random.split(key, 5)
        lim1 = 1.0 / math.sqrt(n_prev)
        lp = {
            "act": act,
            "w1": jax.random.uniform(k1, (n_hid, n_prev), jnp.float32, -lim1, lim1),
            "b1": jax.random.uniform(k2, (n_hid,), jnp.float32, -lim1, lim1),
        }
        if act in ("SKIP", "MUL"):
            in2 = n_input if act == "SKIP" else n_prev
            lim2 = 1.0 / math.sqrt(in2)
            lp["w2"] = jax.random.uniform(k3, (n_hid, in2), jnp.float32, -lim2, lim2)
            lp["b2"] = jax.random.uniform(k4, (n_hid,), jnp.float32, -lim2, lim2)
        layers.append(lp)
        n_prev = n_hid
    key, kf = jax.random.split(key)
    limf = 1.0 / math.sqrt(n_prev)
    wf = jax.random.uniform(kf, (1, n_prev), jnp.float32, -limf, limf)
    return layers, wf


# ---- host-side packing: one padded bf16 buffer + static metadata ------------
def pack_params(layer_params, wf, n_input):
    # +1 feature row carries a constant 1.0 so layer-1 biases fold into weights
    n_in_pad = _round_up(n_input + 1, _ROW_ALIGN)
    blocks, metas = [], []
    r = 0
    w_prev = n_in_pad            # feature width of y as the kernel sees it
    max_cols = 1
    for li, lp in enumerate(layer_params):
        act = lp["act"]
        w1 = np.asarray(lp["w1"], np.float32)
        b1 = np.asarray(lp["b1"], np.float32)
        n_hid = w1.shape[0]
        fold = (li == 0)         # layer-1 lhs is x, which has the ones row
        if act in ("SQUARE", "LINEAR"):
            nrows, c_y, c_x = n_hid, w_prev, 0
            blk = np.zeros((nrows, c_y), np.float32)
            blk[:, : w1.shape[1]] = w1
            bias = b1.copy()
        elif act == "MUL":
            w2 = np.asarray(lp["w2"], np.float32)
            b2 = np.asarray(lp["b2"], np.float32)
            nrows, c_y, c_x = 2 * n_hid, w_prev, 0
            blk = np.zeros((nrows, c_y), np.float32)
            blk[:n_hid, : w1.shape[1]] = w1
            blk[n_hid:, : w2.shape[1]] = w2
            bias = np.concatenate([b1, b2])
        elif act == "SKIP":
            w2 = np.asarray(lp["w2"], np.float32)
            b2 = np.asarray(lp["b2"], np.float32)
            nrows, c_y, c_x = 2 * n_hid, w_prev, n_in_pad
            blk = np.zeros((nrows, c_y + c_x), np.float32)
            blk[:n_hid, : w1.shape[1]] = w1                       # acts on y
            blk[n_hid:, c_y : c_y + w2.shape[1]] = w2             # acts on x
            bias = np.concatenate([b1, b2])
        else:
            raise ValueError(f"unknown act {act}")

        if fold:  # write biases into the "ones" column of the layer-1 weights
            if act == "SKIP":
                blk[:n_hid, n_input] = b1
                blk[n_hid:, c_y + n_input] = b2
            else:
                blk[:, n_input] = bias

        metas.append((act, r, n_hid, c_y, c_x, not fold))
        blocks.append((r, blk, None if fold else bias))
        r += _round_up(nrows, _ROW_ALIGN)
        w_prev = n_hid
        max_cols = max(max_cols, blk.shape[1])

    wf = np.asarray(wf, np.float32)
    nh = wf.shape[1]
    r_head = r
    r += _round_up(nh, _ROW_ALIGN)

    R = _round_up(r, _ROW_ALIGN)
    C = _round_up(max_cols + 1, _LANE)
    bias_col = C - 1
    pack = np.zeros((R, C), np.float32)
    for r0, blk, bias in blocks:
        pack[r0 : r0 + blk.shape[0], : blk.shape[1]] = blk
        if bias is not None:
            pack[r0 : r0 + bias.shape[0], bias_col] = bias
    pack[r_head : r_head + nh, 0] = wf[0]

    meta = dict(layers=tuple(metas), head=(r_head, nh), bias_col=bias_col,
                n_in_pad=n_in_pad, n_input=n_input)
    return jnp.asarray(pack, dtype=jnp.bfloat16), meta


# ---- batch tiling: big tiles, but keep >=2 grid steps (v7x megacore) --------
def _tiling(batch, tile_b):
    b128 = _round_up(max(batch, 1), _LANE)
    n_tiles = _cdiv(b128, tile_b)
    if b128 > _LANE:                 # both v7x TensorCores should get work
        n_tiles = max(n_tiles, 2)
    tb = _round_up(_cdiv(b128, n_tiles), _LANE)
    return tb, n_tiles * tb


# ---- wrapper ----------------------------------------------------------------
def net_forward(x, pack, meta, *, tile_b=4096):
    B = x.shape[0]
    n_in_pad = meta["n_in_pad"]
    n_input = meta["n_input"]
    tb, B_pad = _tiling(B, tile_b)

    # Fused pad (+ ones row for the folded layer-1 bias) + transpose + bf16 cast.
    x32 = x.astype(jnp.float32)
    x1 = jnp.concatenate([x32, jnp.ones((B, 1), jnp.float32)], axis=1)
    xt = jnp.pad(x1, ((0, B_pad - B), (0, n_in_pad - (n_input + 1))))
    xt = xt.T.astype(jnp.bfloat16)                       # [n_in_pad, B_pad]

    kernel = functools.partial(
        _net_kernel, meta["layers"], meta["head"], meta["bias_col"])

    out = pl.pallas_call(
        kernel,
        out_shape=jax.ShapeDtypeStruct((1, B_pad), jnp.float32),
        grid=(B_pad // tb,),
        in_specs=[
            pl.BlockSpec((n_in_pad, tb), lambda i: (0, i)),   # x: tiled over batch
            pl.BlockSpec(pack.shape, lambda i: (0, 0)),       # params: VMEM-resident
        ],
        out_specs=pl.BlockSpec((1, tb), lambda i: (0, i)),
        compiler_params=pltpu.CompilerParams(
            dimension_semantics=("parallel",),
            vmem_limit_bytes=32 * 1024 * 1024),
    )(xt, pack)
    return out[0, :B].reshape(B, 1)


# ---- pure-JAX reference (torch-layout math, batch-major, full f32) ----------
def net_ref(x, layer_params, wf):
    y = x
    for lp in layer_params:
        act = lp["act"]
        z1 = y @ lp["w1"].T + lp["b1"]
        if act == "SQUARE":
            y = z1 * z1
        elif act == "LINEAR":
            y = z1
        elif act == "MUL":
            z2 = y @ lp["w2"].T + lp["b2"]
            y = z1 * z2
        elif act == "SKIP":
            z2 = x @ lp["w2"].T + lp["b2"]
            y = z1 * z2
    return y @ wf.T


if __name__ == "__main__":
    key = jax.random.PRNGKey(0)
    key, kx, kp = jax.random.split(key, 3)

    B = 300  # small batch; exercises lane padding and the >=2-step batch grid
    x = jax.random.normal(kx, (B, N_INPUT), jnp.float32)

    layer_params, wf = init_params(kp, N_INPUT, B1_HIDDEN, B1_ACT)
    pack, meta = pack_params(layer_params, wf, N_INPUT)

    out = net_forward(x, pack, meta, tile_b=4096)
    out = jax.block_until_ready(out)

    ref = net_ref(x, layer_params, wf)
    assert out.shape == (B, 1)
    # bf16 MXU inputs vs. f32 reference: 2e-2 tolerance.
    np.testing.assert_allclose(np.asarray(out), np.asarray(ref), rtol=2e-2, atol=2e-2)

    print("KERNEL_OK")
</pallas_src>

<mosaic_0001>
module attributes {stable_mosaic.version = 11 : i64} {
  func.func @_net_kernel(%arg0: i32, %arg1: memref<16x256xbf16, #tpu.memory_space<vmem>>, %arg2: memref<224x128xbf16, #tpu.memory_space<vmem>>, %arg3: memref<1x256xf32, #tpu.memory_space<vmem>>) attributes {dimension_semantics = [#tpu.dimension_semantics<parallel>], iteration_bounds = array<i64: 2>, scalar_prefetch = 0 : i64, scratch_operands = 0 : i64, tpu.core_type = #tpu.core_type<tc>, window_params = [{transform_indices = @transform_0, window_bounds = array<i64: 16, 256>}, {pipeline_mode = #tpu.pipeline_mode<synchronous>, transform_indices = @transform_1, window_bounds = array<i64: 224, 128>}, {transform_indices = @transform_2, window_bounds = array<i64: 1, 256>}]} {
    %c0 = arith.constant 0 : index
    %c0_0 = arith.constant 0 : index
    %0 = vector.load %arg1[%c0, %c0_0] : memref<16x256xbf16, #tpu.memory_space<vmem>>, vector<16x256xbf16>
    %c0_1 = arith.constant 0 : index
    %c0_2 = arith.constant 0 : index
    %1 = vector.load %arg2[%c0_1, %c0_2] : memref<224x128xbf16, #tpu.memory_space<vmem>>, vector<32x16xbf16>
    %cst = arith.constant dense<0.000000e+00> : vector<32x256xf32>
    %2 = tpu.matmul %1, %0, %cst {dimension_numbers = #tpu.dot_dimension_numbers<[1], [0], [0], [1], [0, 0, 1, 1], [], []>} : vector<32x16xbf16>, vector<16x256xbf16>, vector<32x256xf32> -> vector<32x256xf32>
    %3 = arith.mulf %2, %2 : vector<32x256xf32>
    %4 = arith.truncf %3 : vector<32x256xf32> to vector<32x256xbf16>
    %c32 = arith.constant 32 : index
    %c0_3 = arith.constant 0 : index
    %5 = vector.load %arg2[%c32, %c0_3] : memref<224x128xbf16, #tpu.memory_space<vmem>>, vector<64x32xbf16>
    %cst_4 = arith.constant dense<0.000000e+00> : vector<64x256xf32>
    %6 = tpu.matmul %5, %4, %cst_4 {dimension_numbers = #tpu.dot_dimension_numbers<[1], [0], [0], [1], [0, 0, 1, 1], [], []>} : vector<64x32xbf16>, vector<32x256xbf16>, vector<64x256xf32> -> vector<64x256xf32>
    %c32_5 = arith.constant 32 : index
    %c127 = arith.constant 127 : index
    %7 = vector.load %arg2[%c32_5, %c127] : memref<224x128xbf16, #tpu.memory_space<vmem>>, vector<64x1xbf16>
    %8 = arith.extf %7 : vector<64x1xbf16> to vector<64x1xf32>
    %9 = vector.broadcast %8 : vector<64x1xf32> to vector<64x256xf32>
    %10 = arith.addf %6, %9 : vector<64x256xf32>
    %11 = vector.extract_strided_slice %10 {offsets = [0, 0], sizes = [32, 256], strides = [1, 1]} : vector<64x256xf32> to vector<32x256xf32>
    %12 = vector.extract_strided_slice %10 {offsets = [32, 0], sizes = [32, 256], strides = [1, 1]} : vector<64x256xf32> to vector<32x256xf32>
    %13 = arith.mulf %11, %12 : vector<32x256xf32>
    %14 = arith.truncf %13 : vector<32x256xf32> to vector<32x256xbf16>
    %c96 = arith.constant 96 : index
    %c0_6 = arith.constant 0 : index
    %15 = vector.load %arg2[%c96, %c0_6] : memref<224x128xbf16, #tpu.memory_space<vmem>>, vector<64x32xbf16>
    %cst_7 = arith.constant dense<0.000000e+00> : vector<64x256xf32>
    %16 = tpu.matmul %15, %14, %cst_7 {dimension_numbers = #tpu.dot_dimension_numbers<[1], [0], [0], [1], [0, 0, 1, 1], [], []>} : vector<64x32xbf16>, vector<32x256xbf16>, vector<64x256xf32> -> vector<64x256xf32>
    %c96_8 = arith.constant 96 : index
    %c32_9 = arith.constant 32 : index
    %17 = vector.load %arg2[%c96_8, %c32_9] : memref<224x128xbf16, #tpu.memory_space<vmem>>, vector<64x16xbf16>
    %cst_10 = arith.constant dense<0.000000e+00> : vector<64x256xf32>
    %18 = tpu.matmul %17, %0, %cst_10 {dimension_numbers = #tpu.dot_dimension_numbers<[1], [0], [0], [1], [0, 0, 1, 1], [], []>} : vector<64x16xbf16>, vector<16x256xbf16>, vector<64x256xf32> -> vector<64x256xf32>
    %19 = arith.addf %16, %18 : vector<64x256xf32>
    %c96_11 = arith.constant 96 : index
    %c127_12 = arith.constant 127 : index
    %20 = vector.load %arg2[%c96_11, %c127_12] : memref<224x128xbf16, #tpu.memory_space<vmem>>, vector<64x1xbf16>
    %21 = arith.extf %20 : vector<64x1xbf16> to vector<64x1xf32>
    %22 = vector.broadcast %21 : vector<64x1xf32> to vector<64x256xf32>
    %23 = arith.addf %19, %22 : vector<64x256xf32>
    %24 = vector.extract_strided_slice %23 {offsets = [0, 0], sizes = [32, 256], strides = [1, 1]} : vector<64x256xf32> to vector<32x256xf32>
    %25 = vector.extract_strided_slice %23 {offsets = [32, 0], sizes = [32, 256], strides = [1, 1]} : vector<64x256xf32> to vector<32x256xf32>
    %26 = arith.mulf %24, %25 : vector<32x256xf32>
    %27 = arith.truncf %26 : vector<32x256xf32> to vector<32x256xbf16>
    %c160 = arith.constant 160 : index
    %c0_13 = arith.constant 0 : index
    %28 = vector.load %arg2[%c160, %c0_13] : memref<224x128xbf16, #tpu.memory_space<vmem>>, vector<32x32xbf16>
    %cst_14 = arith.constant dense<0.000000e+00> : vector<32x256xf32>
    %29 = tpu.matmul %28, %27, %cst_14 {dimension_numbers = #tpu.dot_dimension_numbers<[1], [0], [0], [1], [0, 0, 1, 1], [], []>} : vector<32x32xbf16>, vector<32x256xbf16>, vector<32x256xf32> -> vector<32x256xf32>
    %c160_15 = arith.constant 160 : index
    %c127_16 = arith.constant 127 : index
    %30 = vector.load %arg2[%c160_15, %c127_16] : memref<224x128xbf16, #tpu.memory_space<vmem>>, vector<32x1xbf16>
    %31 = arith.extf %30 : vector<32x1xbf16> to vector<32x1xf32>
    %32 = vector.broadcast %31 : vector<32x1xf32> to vector<32x256xf32>
    %33 = arith.addf %29, %32 : vector<32x256xf32>
    %c192 = arith.constant 192 : index
    %c0_17 = arith.constant 0 : index
    %34 = vector.load %arg2[%c192, %c0_17] : memref<224x128xbf16, #tpu.memory_space<vmem>>, vector<32x1xbf16>
    %35 = arith.extf %34 : vector<32x1xbf16> to vector<32x1xf32>
    %36 = vector.broadcast %35 : vector<32x1xf32> to vector<32x256xf32>
    %37 = arith.mulf %33, %36 : vector<32x256xf32>
    %cst_18 = arith.constant dense<0.000000e+00> : vector<256xf32>
    %38 = vector.multi_reduction <add>, %37, %cst_18 [0] : vector<32x256xf32> to vector<256xf32>
    %39 = vector.shape_cast %38 : vector<256xf32> to vector<1x256xf32>
    %c0_19 = arith.constant 0 : index
    %c0_20 = arith.constant 0 : index
    %40 = vector.load %arg3[%c0_19, %c0_20] : memref<1x256xf32, #tpu.memory_space<vmem>>, vector<1x256xf32>
    tpu.vector_store %arg3[%c0_19, %c0_20], %39 {strides = array<i32>} : memref<1x256xf32, #tpu.memory_space<vmem>>, vector<1x256xf32>,
    return
  }
  func.func @transform_0(%arg0: i32) -> (i32, i32) {
    %c0_i32 = arith.constant 0 : i32
    %c0_i32_0 = arith.constant 0 : i32
    return %c0_i32, %arg0 : i32, i32
  }
  func.func @transform_1(%arg0: i32) -> (i32, i32) {
    %c0_i32 = arith.constant 0 : i32
    %c0_i32_0 = arith.constant 0 : i32
    %c0_i32_1 = arith.constant 0 : i32
    return %c0_i32, %c0_i32_0 : i32, i32
  }
  func.func @transform_2(%arg0: i32) -> (i32, i32) {
    %c0_i32 = arith.constant 0 : i32
    %c0_i32_0 = arith.constant 0 : i32
    return %c0_i32, %arg0 : i32, i32
  }
}

</mosaic_0001>

<llo_original>
// kernel: tpu_custom_call.1
$region0: #{tpu_custom_call.1}
  #allocation0 [shape = 'u32[]', space=smem, size = 0x4, offset = 0x4, fixed_abs, tag = 'smem constant byte address 0x4 - core index']
  #allocation1 [shape = 'u32[144,128]{1,0:T(1,128)}', space=vmem, size = 0x12000, scoped, tag = 'internal scratch']
  %s0 = inlined_call_operand.hbm [shape: bf16[16,512], index: 0, kind: input, shape index: {}]
  %s1 = inlined_call_operand.hbm [shape: bf16[224,128], index: 1, kind: input, shape index: {}]
  %s2 = inlined_call_operand.hbm [shape: f32[1,512], index: 2, kind: output, shape index: {}]
  %s3 = sld [smem:[#allocation0]]
  $region49: #{tpu_custom_call.1} parent=0
    _
  %s5 = ssub.s32 1, %s3
  %s6 = scalar_select 0, %s5, %s3
  $region1: #{tpu_custom_call.1} parent=0
    #allocation2 [shape = 'u8[16384]{0}', space=vmem, size = 0x4000, scoped, tag = 'input window, operand 0']
    #allocation3 [shape = 's32[2]{0}', space=sflag, size = 0x8, scoped, tag = 'scoped memory for tpu_custom_call.1']
    #allocation4 [shape = 's32[2]{0}', space=sflag, size = 0x8, scoped, tag = 'scoped memory for tpu_custom_call.1']
    #allocation5 [shape = 'u8[57344]{0}', space=vmem, size = 0xe000, scoped, tag = 'input window, operand 1, single buffered']
    #allocation6 [shape = 's32[1]{0}', space=sflag, size = 0x4, scoped, tag = 'scoped memory for tpu_custom_call.1']
    #allocation7 [shape = 'u8[2048]{0}', space=vmem, size = 0x800, scoped, tag = 'output window, operand 0']
    %7 = vsyncpa [#allocation3], 0
    %s8 = scalar_lea.sflag [#allocation3], 1
    %9 = vsyncpa %s8, 0
    %10 = vsyncpa [#allocation6], 0
    %11 = vsyncpa [#allocation4], 0
    %s12 = scalar_lea.sflag [#allocation4], 1
    %13 = vsyncpa %s12, 0
    loop: start=0, step=1, limit=4
    $region2: #{tpu_custom_call.1} parent=1 // loop_pre_header
      _
    $region3: #{tpu_custom_call.1} parent=1 // loop_header
      %s15 = sphi 0, %s19
      %p16 = scmp.ge.s32.totalorder %s15, 4
      %s25 = sphi 0, %s27
      %s28 = sphi 0, %s25
      %s29 = sphi 0, %s28
      %s45 = sphi 0, %s29
      %s49 = sphi 0, %s49
      %s51 = sphi 0, %s49
      %s52 = sphi 0, %s51
      %s66 = sphi 0, %s52
      %s72 = sphi 0, %s74
      %s75 = sphi 0, %s72
      %s76 = sphi 0, %s75
      %s92 = sphi 0, %s76
    $region4: #{tpu_custom_call.1} parent=1 // loop_header_branch
      %18 = sbr.rel (%p16) target = $region8
    $region5: #{tpu_custom_call.1} parent=1 // loop_body
      %s20 = ssub.s32 %s15, 1
      %s21 = ssub.s32 %s15, 2
      %s22 = sadd.s32 %s15, 1
      %s23 = ssub.s32 %s15, %s22
      %p24 = scmp.eq.s32.totalorder %s23, 0
      %s26 = sadd.s32 %s25, 1
      %s27 = scalar_select %p24, %s25, %s26
      %p30 = pneg %p24
      %p31 = scmp.eq.s32.totalorder %s15, 1
      %p32 = por %p30, %p31
      %p33 = scmp.ne.s32.totalorder %s25, %s28
      %p34 = scmp.eq.s32.totalorder %s15, 0
      %p35 = por %p33, %p34
      %p36 = scmp.ne.s32.totalorder %s25, %s28
      %p37 = scmp.eq.s32.totalorder %s20, 1
      %p38 = por %p36, %p37
      %p39 = scmp.ne.s32.totalorder %s28, %s29
      %p40 = scmp.eq.s32.totalorder %s20, 0
      %p41 = por %p39, %p40
      %p42 = scmp.ne.s32.totalorder %s28, %s29
      %p43 = scmp.eq.s32.totalorder %s21, 1
      %p44 = por %p42, %p43
      %p46 = scmp.ne.s32.totalorder %s29, %s45
      %p47 = scmp.eq.s32.totalorder %s21, 0
      %p48 = por %p46, %p47
      %s50 = sadd.s32 %s49, 1
      %p53 = scmp.eq.s32.totalorder %s15, 1
      %p54 = scmp.ne.s32.totalorder %s49, %s51
      %p55 = scmp.eq.s32.totalorder %s15, 0
      %p56 = por %p54, %p55
      %p57 = scmp.ne.s32.totalorder %s49, %s51
      %p58 = scmp.eq.s32.totalorder %s20, 1
      %p59 = por %p57, %p58
      %p60 = scmp.ne.s32.totalorder %s51, %s52
      %p61 = scmp.eq.s32.totalorder %s20, 0
      %p62 = por %p60, %p61
      %p63 = scmp.ne.s32.totalorder %s51, %s52
      %p64 = scmp.eq.s32.totalorder %s21, 1
      %p65 = por %p63, %p64
      %p67 = scmp.ne.s32.totalorder %s52, %s66
      %p68 = scmp.eq.s32.totalorder %s21, 0
      %p69 = por %p67, %p68
      %s70 = ssub.s32 %s15, %s22
      %p71 = scmp.eq.s32.totalorder %s70, 0
      %s73 = sadd.s32 %s72, 1
      %s74 = scalar_select %p71, %s72, %s73
      %p77 = pneg %p71
      %p78 = scmp.eq.s32.totalorder %s15, 1
      %p79 = por %p77, %p78
      %p80 = scmp.ne.s32.totalorder %s72, %s75
      %p81 = scmp.eq.s32.totalorder %s15, 0
      %p82 = por %p80, %p81
      %p83 = scmp.ne.s32.totalorder %s72, %s75
      %p84 = scmp.eq.s32.totalorder %s20, 1
      %p85 = por %p83, %p84
      %p86 = scmp.ne.s32.totalorder %s75, %s76
      %p87 = scmp.eq.s32.totalorder %s20, 0
      %p88 = por %p86, %p87
      %p89 = scmp.ne.s32.totalorder %s75, %s76
      %p90 = scmp.eq.s32.totalorder %s21, 1
      %p91 = por %p89, %p90
      %p93 = scmp.ne.s32.totalorder %s76, %s92
      %p94 = scmp.eq.s32.totalorder %s21, 0
      %p95 = por %p93, %p94
      %p96 = scmp.le.s32.totalorder 1, %s15
      %p97 = scmp.lt.s32.totalorder %s15, 3
      %p98 = pnand %p96, %p97
      %p99 = pneg %p98
      // Predicated region
      $region9: #{tpu_custom_call.1} parent=5 // pred_check
        _
      $region10: #{tpu_custom_call.1} parent=5 // pred_check_branch
        %101 = sbr.rel (%p98) target = $region12
      $region11: #{tpu_custom_call.1} parent=5 // pred_region
        %s102 = ssub.s32 %s15, 1
        // Predicated region
        $region13: #{tpu_custom_call.1} parent=11 // pred_check
          %p103 = pneg %p62
        $region14: #{tpu_custom_call.1} parent=11 // pred_check_branch
          %105 = sbr.rel (%p103) target = $region16
        $region15: #{tpu_custom_call.1} parent=11 // pred_region
          %s107 = ssub.s32 1792, 1792
          %108 = vsyncadd [#allocation6], %s107
          %s109 = sshll.u32 [#allocation5], 4
          %s110 = int_to_ptr.vmem [resolvable:$true] %s109
          %115 = dma.hbm_to_vmem [thread:$0]  %s1, 1792, %s110, [#allocation6], 64, 64, 4
        $region16: #{tpu_custom_call.1} parent=11 // pred_fallthru
          _
      $region12: #{tpu_custom_call.1} parent=5 // pred_fallthru
        _
      %p116 = scmp.lt.s32.totalorder %s15, 2
      // Predicated region
      $region17: #{tpu_custom_call.1} parent=5 // pred_check
        %p117 = pneg %p116
      $region18: #{tpu_custom_call.1} parent=5 // pred_check_branch
        %119 = sbr.rel (%p117) target = $region20
      $region19: #{tpu_custom_call.1} parent=5 // pred_region
        // Predicated region
        $region21: #{tpu_custom_call.1} parent=19 // pred_check
          %p120 = pneg %p35
        $region22: #{tpu_custom_call.1} parent=19 // pred_check_branch
          %122 = sbr.rel (%p120) target = $region24
        $region23: #{tpu_custom_call.1} parent=19 // pred_region
          %s123 = sand.u32 %s25, 1
          %s124 = scalar_lea.sflag [#allocation3], %s123
          %s125 = sand.u32 %s25, 1
          %s126 = smul.addr %s125, 16
          %s127 = scalar_lea.vmem [#allocation2], %s126
          %s128 = smul.u32 2, %s15
          %s130 = ssub.s32 256, 256
          %131 = vsyncadd %s124, %s130
          %s132 = smul.addr %s128, 64
          %s133 = scalar_lea.hbm %s0, %s132
          %s134 = sshll.u32 %s127, 4
          %s135 = int_to_ptr.vmem [resolvable:$true] %s134
          %140 = dma.hbm_to_vmem [thread:$0]  %s133, 256, %s135, %s124, 256, 128, 8
        $region24: #{tpu_custom_call.1} parent=19 // pred_fallthru
          _
      $region20: #{tpu_custom_call.1} parent=5 // pred_fallthru
        _
      %p141 = scmp.le.s32.totalorder 1, %s15
      %p142 = scmp.lt.s32.totalorder %s15, 3
      %p143 = pnand %p141, %p142
      %p144 = pneg %p143
      // Predicated region
      $region25: #{tpu_custom_call.1} parent=5 // pred_check
        _
      $region26: #{tpu_custom_call.1} parent=5 // pred_check_branch
        %146 = sbr.rel (%p143) target = $region28
      $region27: #{tpu_custom_call.1} parent=5 // pred_region
        %s147 = ssub.s32 %s15, 1
        %s148 = sand.u32 %s28, 1
        %s149 = scalar_lea.sflag [#allocation3], %s148
        %s150 = sand.u32 %s28, 1
        %s151 = smul.addr %s150, 16
        %s152 = scalar_lea.vmem [#allocation2], %s151
        // Predicated region
        $region29: #{tpu_custom_call.1} parent=27 // pred_check
          %p153 = pneg %p41
        $region30: #{tpu_custom_call.1} parent=27 // pred_check_branch
          %155 = sbr.rel (%p153) target = $region32
        $region31: #{tpu_custom_call.1} parent=27 // pred_region
          %156 = dma.done %s149, 256
        $region32: #{tpu_custom_call.1} parent=27 // pred_fallthru
          _
        // Predicated region
        $region33: #{tpu_custom_call.1} parent=27 // pred_check
          %p157 = pneg %p62
        $region34: #{tpu_custom_call.1} parent=27 // pred_check_branch
          %159 = sbr.rel (%p157) target = $region36
        $region35: #{tpu_custom_call.1} parent=27 // pred_region
          %160 = dma.done [#allocation6], 1792
        $region36: #{tpu_custom_call.1} parent=27 // pred_fallthru
          _
        %s161 = sand.u32 %s28, 1
        %s162 = scalar_lea.sflag [#allocation3], %s161
        %s163 = sand.u32 %s28, 1
        %s164 = smul.addr %s163, 16
        %s165 = scalar_lea.vmem [#allocation2], %s164
        %p166 = pneg %p41
        %p167 = pneg %p38
        %p168 = pneg %p62
        %p169 = pneg %p59
        %p170 = pneg %p88
        %p171 = pneg %p85
        %s172 = sand.u32 %s75, 1
        %s173 = scalar_lea.sflag [#allocation4], %s172
        %s174 = sand.u32 %s75, 1
        %s175 = smul.addr %s174, 2
        %s176 = scalar_lea.vmem [#allocation7], %s175
        %s177 = smul.u32 2, %s20
        %s178 = smul.u32 2, %s20
        %v180 = vld [vmem:[%s152] sm:$0xff]
        %v181 = vld [vmem:[%s152 + $0x8] sm:$0xff]
        %v182 = vld [vmem:[#allocation5] sm:$0xf]
        %v183 = vld [vmem:[#allocation5 + $0x4] sm:$0xf]
        %v184 = vld [vmem:[#allocation5 + $0x8] sm:$0xf]
        %v185 = vld [vmem:[#allocation5 + $0xc] sm:$0xf]
        %v190 = vunpack.c.l.b16 %v182
        %v191 = vunpack.c.l.b16 %v183
        %v192 = vunpack.c.l.b16 %v184
        %v193 = vunpack.c.l.b16 %v185
        %v194 = vpack.c.b16 %v191, %v190
        %v195 = vpack.c.b16 %v193, %v192
        %v198 = vunpack.c.l.b16 %v180
        %v199 = vunpack.c.h.b16 %v180
        %v200 = vunpack.c.l.b16 %v181
        %v201 = vunpack.c.h.b16 %v181
        %v202 = vpack.c.b16 %v200, %v198
        %v203 = vpack.c.b16 %v201, %v199
        %vm206 = vcmask 130048
        %v208 = vsel %vm206, %v194, 0
        %v211 = vsel %vm206, %v195, 0
        %213 = vmatprep.subr.bf16.mxu0 %v203
        %214 = vmatpush1.bf16.msra.mxu0 %v202
        %215 = vmatprep.subr.bf16.mxu0 0
        %216 = vmatpush1.bf16.msra.mxu0 0
        %217 = vmatprep.subr.bf16.mxu0 0
        %218 = vmatpush1.bf16.msra.mxu0 0
        %219 = vmatprep.subr.bf16.mxu0 0
        %220 = vmatpush1.bf16.msra.mxu0 0
        %221 = vmatprep.subr.bf16.mxu0 0
        %222 = vmatpush1.bf16.msra.mxu0 0
        %223 = vmatprep.subr.bf16.mxu0 0
        %224 = vmatpush1.bf16.msra.mxu0 0
        %225 = vmatprep.subr.bf16.mxu0 0
        %226 = vmatpush1.bf16.msra.mxu0 0
        %227 = vmatprep.subr.bf16.mxu0 0
        %228 = vmatpush1.bf16.msra.mxu0 0
        %229 = vmatprep.subr.bf16.mxu0 0
        %230 = vmatpush1.bf16.msra.mxu0 0
        %231 = vmatprep.subr.bf16.mxu0 0
        %232 = vmatpush1.bf16.msra.mxu0 0
        %233 = vmatprep.subr.bf16.mxu0 0
        %234 = vmatpush1.bf16.msra.mxu0 0
        %235 = vmatprep.subr.bf16.mxu0 0
        %236 = vmatpush1.bf16.msra.mxu0 0
        %237 = vmatprep.subr.bf16.mxu0 0
        %238 = vmatpush1.bf16.msra.mxu0 0
        %239 = vmatprep.subr.bf16.mxu0 0
        %240 = vmatpush1.bf16.msra.mxu0 0
        %241 = vmatprep.subr.bf16.mxu0 0
        %242 = vmatpush1.bf16.msra.mxu0 0
        %243 = vmatprep.subr.bf16.mxu0 0
        %244 = vmatpush1.bf16.msra.mxu0 0
        %245 = vmatprep.mubr.bf16.mxu0 0
        %246 = vmatmul.mubr.bf16.gmra.mrb[0].mxu0 %v208
        %v247 = vpop.f32.mrb[0].mxu0
        %v248 = vadd.f32 0.0, %v247
        %v249 = vpop.f32.mrb[0].mxu0
        %v250 = vadd.f32 0.0, %v249
        %v251 = vpop.f32.mrb[0].mxu0
        %v252 = vadd.f32 0.0, %v251
        %v253 = vpop.f32.mrb[0].mxu0
        %v254 = vadd.f32 0.0, %v253
        %255 = vmatprep.mubr.bf16.mxu0 0
        %256 = vmatmul.mubr.bf16.gmra.mrb[0].mxu0 %v211
        %v257 = vpop.f32.mrb[0].mxu0
        %v258 = vadd.f32 0.0, %v257
        %v259 = vpop.f32.mrb[0].mxu0
        %v260 = vadd.f32 0.0, %v259
        %v261 = vpop.f32.mrb[0].mxu0
        %v262 = vadd.f32 0.0, %v261
        %v263 = vpop.f32.mrb[0].mxu0
        %v264 = vadd.f32 0.0, %v263
        %265 = vdwg.mxu0
        %v266 = vmul.f32 %v248, %v248
        %v267 = vmul.f32 %v250, %v250
        %v268 = vmul.f32 %v252, %v252
        %v269 = vmul.f32 %v254, %v254
        %v270 = vmul.f32 %v258, %v258
        %v271 = vmul.f32 %v260, %v260
        %v272 = vmul.f32 %v262, %v262
        %v273 = vmul.f32 %v264, %v264
        %v274 = vpack.c.bf16 %v268, %v266
        %v275 = vpack.c.bf16 %v269, %v267
        %v276 = vpack.c.bf16 %v272, %v270
        %v277 = vpack.c.bf16 %v273, %v271
        %v278 = vld [vmem:[#allocation5 + $0x10] sm:$0xf]
        %v279 = vld [vmem:[#allocation5 + $0x14] sm:$0xf]
        %v280 = vld [vmem:[#allocation5 + $0x18] sm:$0xf]
        %v281 = vld [vmem:[#allocation5 + $0x1c] sm:$0xf]
        %v282 = vld [vmem:[#allocation5 + $0x20] sm:$0xf]
        %v283 = vld [vmem:[#allocation5 + $0x24] sm:$0xf]
        %v284 = vld [vmem:[#allocation5 + $0x28] sm:$0xf]
        %v285 = vld [vmem:[#allocation5 + $0x2c] sm:$0xf]
        %v286 = vunpack.c.l.bf16 %v278
        %v287 = vunpack.c.l.bf16 %v279
        %v288 = vunpack.c.l.bf16 %v280
        %v289 = vunpack.c.l.bf16 %v281
        %v290 = vunpack.c.l.bf16 %v282
        %v291 = vunpack.c.l.bf16 %v283
        %v292 = vunpack.c.l.bf16 %v284
        %v293 = vunpack.c.l.bf16 %v285
        %295 = vset.pattern.permute.xlu0 127
        %296 = vperm.xlu0 %295, %v286
        %v297 = vpop.permute.xlu0 %296
        %300 = vset.pattern.permute.xlu0 127
        %301 = vperm.xlu0 %300, %v287
        %v302 = vpop.permute.xlu0 %301
        %305 = vset.pattern.permute.xlu0 127
        %306 = vperm.xlu0 %305, %v288
        %v307 = vpop.permute.xlu0 %306
        %310 = vset.pattern.permute.xlu0 127
        %311 = vperm.xlu0 %310, %v289
        %v312 = vpop.permute.xlu0 %311
        %315 = vset.pattern.permute.xlu0 127
        %316 = vperm.xlu0 %315, %v290
        %v317 = vpop.permute.xlu0 %316
        %320 = vset.pattern.permute.xlu0 127
        %321 = vperm.xlu0 %320, %v291
        %v322 = vpop.permute.xlu0 %321
        %325 = vset.pattern.permute.xlu0 127
        %326 = vperm.xlu0 %325, %v292
        %v327 = vpop.permute.xlu0 %326
        %330 = vset.pattern.permute.xlu0 127
        %331 = vperm.xlu0 %330, %v293
        %v332 = vpop.permute.xlu0 %331
        %v342 = vunpack.c.l.b16 %v278
        %v343 = vunpack.c.l.b16 %v279
        %v344 = vunpack.c.l.b16 %v280
        %v345 = vunpack.c.l.b16 %v281
        %v346 = vunpack.c.l.b16 %v282
        %v347 = vunpack.c.l.b16 %v283
        %v348 = vunpack.c.l.b16 %v284
        %v349 = vunpack.c.l.b16 %v285
        %v350 = vpack.c.b16 %v343, %v342
        %v351 = vpack.c.b16 %v345, %v344
        %v352 = vpack.c.b16 %v347, %v346
        %v353 = vpack.c.b16 %v349, %v348
        %vm354 = vcmask 261120
        %v356 = vsel %vm354, %v350, 0
        %v359 = vsel %vm354, %v351, 0
        %v362 = vsel %vm354, %v352, 0
        %v365 = vsel %vm354, %v353, 0
        %367 = vmatprep.subr.bf16.mxu0 %v275
        %368 = vmatpush1.bf16.msra.mxu0 %v274
        %369 = vmatprep.subr.bf16.mxu0 %v277
        %370 = vmatpush1.bf16.msra.mxu0 %v276
        %371 = vmatprep.subr.bf16.mxu0 0
        %372 = vmatpush1.bf16.msra.mxu0 0
        %373 = vmatprep.subr.bf16.mxu0 0
        %374 = vmatpush1.bf16.msra.mxu0 0
        %375 = vmatprep.subr.bf16.mxu0 0
        %376 = vmatpush1.bf16.msra.mxu0 0
        %377 = vmatprep.subr.bf16.mxu0 0
        %378 = vmatpush1.bf16.msra.mxu0 0
        %379 = vmatprep.subr.bf16.mxu0 0
        %380 = vmatpush1.bf16.msra.mxu0 0
        %381 = vmatprep.subr.bf16.mxu0 0
        %382 = vmatpush1.bf16.msra.mxu0 0
        %383 = vmatprep.subr.bf16.mxu0 0
        %384 = vmatpush1.bf16.msra.mxu0 0
        %385 = vmatprep.subr.bf16.mxu0 0
        %386 = vmatpush1.bf16.msra.mxu0 0
        %387 = vmatprep.subr.bf16.mxu0 0
        %388 = vmatpush1.bf16.msra.mxu0 0
        %389 = vmatprep.subr.bf16.mxu0 0
        %390 = vmatpush1.bf16.msra.mxu0 0
        %391 = vmatprep.subr.bf16.mxu0 0
        %392 = vmatpush1.bf16.msra.mxu0 0
        %393 = vmatprep.subr.bf16.mxu0 0
        %394 = vmatpush1.bf16.msra.mxu0 0
        %395 = vmatprep.subr.bf16.mxu0 0
        %396 = vmatpush1.bf16.msra.mxu0 0
        %397 = vmatprep.subr.bf16.mxu0 0
        %398 = vmatpush1.bf16.msra.mxu0 0
        %399 = vmatprep.mubr.bf16.mxu0 0
        %400 = vmatmul.mubr.bf16.gmra.mrb[0].mxu0 %v356
        %v401 = vpop.f32.mrb[0].mxu0
        %v402 = vadd.f32 %v297, %v401
        %v403 = vpop.f32.mrb[0].mxu0
        %v404 = vadd.f32 %v297, %v403
        %v405 = vpop.f32.mrb[0].mxu0
        %v406 = vadd.f32 %v302, %v405
        %v407 = vpop.f32.mrb[0].mxu0
        %v408 = vadd.f32 %v302, %v407
        %409 = vmatprep.mubr.bf16.mxu0 0
        %410 = vmatmul.mubr.bf16.gmra.mrb[0].mxu0 %v359
        %v411 = vpop.f32.mrb[0].mxu0
        %v412 = vadd.f32 %v307, %v411
        %v413 = vpop.f32.mrb[0].mxu0
        %v414 = vadd.f32 %v307, %v413
        %v415 = vpop.f32.mrb[0].mxu0
        %v416 = vadd.f32 %v312, %v415
        %v417 = vpop.f32.mrb[0].mxu0
        %v418 = vadd.f32 %v312, %v417
        %419 = vmatprep.mubr.bf16.mxu0 0
        %420 = vmatmul.mubr.bf16.gmra.mrb[0].mxu0 %v362
        %v421 = vpop.f32.mrb[0].mxu0
        %v422 = vadd.f32 %v317, %v421
        %v423 = vpop.f32.mrb[0].mxu0
        %v424 = vadd.f32 %v317, %v423
        %v425 = vpop.f32.mrb[0].mxu0
        %v426 = vadd.f32 %v322, %v425
        %v427 = vpop.f32.mrb[0].mxu0
        %v428 = vadd.f32 %v322, %v427
        %429 = vmatprep.mubr.bf16.mxu0 0
        %430 = vmatmul.mubr.bf16.gmra.mrb[0].mxu0 %v365
        %v431 = vpop.f32.mrb[0].mxu0
        %v432 = vadd.f32 %v327, %v431
        %v433 = vpop.f32.mrb[0].mxu0
        %v434 = vadd.f32 %v327, %v433
        %v435 = vpop.f32.mrb[0].mxu0
        %v436 = vadd.f32 %v332, %v435
        %v437 = vpop.f32.mrb[0].mxu0
        %v438 = vadd.f32 %v332, %v437
        %439 = vdwg.mxu0
        %v440 = vmul.f32 %v402, %v422
        %v441 = vmul.f32 %v404, %v424
        %v442 = vmul.f32 %v406, %v426
        %v443 = vmul.f32 %v408, %v428
        %v444 = vmul.f32 %v412, %v432
        %v445 = vmul.f32 %v414, %v434
        %v446 = vmul.f32 %v416, %v436
        %v447 = vmul.f32 %v418, %v438
        %v448 = vpack.c.bf16 %v442, %v440
        %v449 = vpack.c.bf16 %v443, %v441
        %v450 = vpack.c.bf16 %v446, %v444
        %v451 = vpack.c.bf16 %v447, %v445
        %v452 = vld [vmem:[#allocation5 + $0x30] sm:$0xf]
        %v453 = vld [vmem:[#allocation5 + $0x34] sm:$0xf]
        %v454 = vld [vmem:[#allocation5 + $0x38] sm:$0xf]
        %v455 = vld [vmem:[#allocation5 + $0x3c] sm:$0xf]
        %v456 = vld [vmem:[#allocation5 + $0x40] sm:$0xf]
        %v457 = vld [vmem:[#allocation5 + $0x44] sm:$0xf]
        %v458 = vld [vmem:[#allocation5 + $0x48] sm:$0xf]
        %v459 = vld [vmem:[#allocation5 + $0x4c] sm:$0xf]
        %v468 = vunpack.c.l.b16 %v452
        %v469 = vunpack.c.l.b16 %v453
        %v470 = vunpack.c.l.b16 %v454
        %v471 = vunpack.c.l.b16 %v455
        %v472 = vunpack.c.l.b16 %v456
        %v473 = vunpack.c.l.b16 %v457
        %v474 = vunpack.c.l.b16 %v458
        %v475 = vunpack.c.l.b16 %v459
        %v476 = vpack.c.b16 %v469, %v468
        %v477 = vpack.c.b16 %v471, %v470
        %v478 = vpack.c.b16 %v473, %v472
        %v479 = vpack.c.b16 %v475, %v474
        %480 = vrot.lane.b32.xlu0 %v476, 96
        %v481 = vpop.permute.xlu0 %480
        %482 = vrot.lane.b32.xlu0 %v477, 96
        %v483 = vpop.permute.xlu0 %482
        %484 = vrot.lane.b32.xlu0 %v478, 96
        %v485 = vpop.permute.xlu0 %484
        %486 = vrot.lane.b32.xlu0 %v479, 96
        %v487 = vpop.permute.xlu0 %486
        %v489 = vsel %vm206, %v481, 0
        %v492 = vsel %vm206, %v483, 0
        %v495 = vsel %vm206, %v485, 0
        %v498 = vsel %vm206, %v487, 0
        %500 = vmatprep.subr.bf16.mxu0 %v203
        %501 = vmatpush1.bf16.msra.mxu0 %v202
        %502 = vmatprep.subr.bf16.mxu0 0
        %503 = vmatpush1.bf16.msra.mxu0 0
        %504 = vmatprep.subr.bf16.mxu0 0
        %505 = vmatpush1.bf16.msra.mxu0 0
        %506 = vmatprep.subr.bf16.mxu0 0
        %507 = vmatpush1.bf16.msra.mxu0 0
        %508 = vmatprep.subr.bf16.mxu0 0
        %509 = vmatpush1.bf16.msra.mxu0 0
        %510 = vmatprep.subr.bf16.mxu0 0
        %511 = vmatpush1.bf16.msra.mxu0 0
        %512 = vmatprep.subr.bf16.mxu0 0
        %513 = vmatpush1.bf16.msra.mxu0 0
        %514 = vmatprep.subr.bf16.mxu0 0
        %515 = vmatpush1.bf16.msra.mxu0 0
        %516 = vmatprep.subr.bf16.mxu0 0
        %517 = vmatpush1.bf16.msra.mxu0 0
        %518 = vmatprep.subr.bf16.mxu0 0
        %519 = vmatpush1.bf16.msra.mxu0 0
        %520 = vmatprep.subr.bf16.mxu0 0
        %521 = vmatpush1.bf16.msra.mxu0 0
        %522 = vmatprep.subr.bf16.mxu0 0
        %523 = vmatpush1.bf16.msra.mxu0 0
        %524 = vmatprep.subr.bf16.mxu0 0
        %525 = vmatpush1.bf16.msra.mxu0 0
        %526 = vmatprep.subr.bf16.mxu0 0
        %527 = vmatpush1.bf16.msra.mxu0 0
        %528 = vmatprep.subr.bf16.mxu0 0
        %529 = vmatpush1.bf16.msra.mxu0 0
        %530 = vmatprep.subr.bf16.mxu0 0
        %531 = vmatpush1.bf16.msra.mxu0 0
        %532 = vmatprep.mubr.bf16.mxu0 0
        %533 = vmatmul.mubr.bf16.gmra.mrb[0].mxu0 %v489
        %v534 = vpop.f32.mrb[0].mxu0
        %v535 = vadd.f32 0.0, %v534
        %v536 = vpop.f32.mrb[0].mxu0
        %v537 = vadd.f32 0.0, %v536
        %v538 = vpop.f32.mrb[0].mxu0
        %v539 = vadd.f32 0.0, %v538
        %v540 = vpop.f32.mrb[0].mxu0
        %v541 = vadd.f32 0.0, %v540
        %542 = vmatprep.mubr.bf16.mxu0 0
        %543 = vmatmul.mubr.bf16.gmra.mrb[0].mxu0 %v492
        %v544 = vpop.f32.mrb[0].mxu0
        %v545 = vadd.f32 0.0, %v544
        %v546 = vpop.f32.mrb[0].mxu0
        %v547 = vadd.f32 0.0, %v546
        %v548 = vpop.f32.mrb[0].mxu0
        %v549 = vadd.f32 0.0, %v548
        %v550 = vpop.f32.mrb[0].mxu0
        %v551 = vadd.f32 0.0, %v550
        %552 = vmatprep.mubr.bf16.mxu0 0
        %553 = vmatmul.mubr.bf16.gmra.mrb[0].mxu0 %v495
        %v554 = vpop.f32.mrb[0].mxu0
        %v555 = vadd.f32 0.0, %v554
        %v556 = vpop.f32.mrb[0].mxu0
        %v557 = vadd.f32 0.0, %v556
        %v558 = vpop.f32.mrb[0].mxu0
        %v559 = vadd.f32 0.0, %v558
        %v560 = vpop.f32.mrb[0].mxu0
        %v561 = vadd.f32 0.0, %v560
        %562 = vmatprep.mubr.bf16.mxu0 0
        %563 = vmatmul.mubr.bf16.gmra.mrb[0].mxu0 %v498
        %v564 = vpop.f32.mrb[0].mxu0
        %v565 = vadd.f32 0.0, %v564
        %v566 = vpop.f32.mrb[0].mxu0
        %v567 = vadd.f32 0.0, %v566
        %v568 = vpop.f32.mrb[0].mxu0
        %v569 = vadd.f32 0.0, %v568
        %v570 = vpop.f32.mrb[0].mxu0
        %v571 = vadd.f32 0.0, %v570
        %572 = vdwg.mxu0
        %v574 = vsel %vm354, %v476, 0
        %v577 = vsel %vm354, %v477, 0
        %v580 = vsel %vm354, %v478, 0
        %v583 = vsel %vm354, %v479, 0
        %585 = vmatprep.subr.bf16.mxu0 %v449
        %586 = vmatpush1.bf16.msra.mxu0 %v448
        %587 = vmatprep.subr.bf16.mxu0 %v451
        %588 = vmatpush1.bf16.msra.mxu0 %v450
        %589 = vmatprep.subr.bf16.mxu0 0
        %590 = vmatpush1.bf16.msra.mxu0 0
        %591 = vmatprep.subr.bf16.mxu0 0
        %592 = vmatpush1.bf16.msra.mxu0 0
        %593 = vmatprep.subr.bf16.mxu0 0
        %594 = vmatpush1.bf16.msra.mxu0 0
        %595 = vmatprep.subr.bf16.mxu0 0
        %596 = vmatpush1.bf16.msra.mxu0 0
        %597 = vmatprep.subr.bf16.mxu0 0
        %598 = vmatpush1.bf16.msra.mxu0 0
        %599 = vmatprep.subr.bf16.mxu0 0
        %600 = vmatpush1.bf16.msra.mxu0 0
        %601 = vmatprep.subr.bf16.mxu0 0
        %602 = vmatpush1.bf16.msra.mxu0 0
        %603 = vmatprep.subr.bf16.mxu0 0
        %604 = vmatpush1.bf16.msra.mxu0 0
        %605 = vmatprep.subr.bf16.mxu0 0
        %606 = vmatpush1.bf16.msra.mxu0 0
        %607 = vmatprep.subr.bf16.mxu0 0
        %608 = vmatpush1.bf16.msra.mxu0 0
        %609 = vmatprep.subr.bf16.mxu0 0
        %610 = vmatpush1.bf16.msra.mxu0 0
        %611 = vmatprep.subr.bf16.mxu0 0
        %612 = vmatpush1.bf16.msra.mxu0 0
        %613 = vmatprep.subr.bf16.mxu0 0
        %614 = vmatpush1.bf16.msra.mxu0 0
        %615 = vmatprep.subr.bf16.mxu0 0
        %616 = vmatpush1.bf16.msra.mxu0 0
        %617 = vmatprep.mubr.bf16.mxu0 0
        %618 = vmatmul.mubr.bf16.gmra.mrb[0].mxu0 %v574
        %v619 = vpop.f32.mrb[0].mxu0
        %v620 = vadd.f32 %v535, %v619
        %v621 = vpop.f32.mrb[0].mxu0
        %v622 = vadd.f32 %v537, %v621
        %v623 = vpop.f32.mrb[0].mxu0
        %v624 = vadd.f32 %v539, %v623
        %v625 = vpop.f32.mrb[0].mxu0
        %v626 = vadd.f32 %v541, %v625
        %627 = vmatprep.mubr.bf16.mxu0 0
        %628 = vmatmul.mubr.bf16.gmra.mrb[0].mxu0 %v577
        %v629 = vpop.f32.mrb[0].mxu0
        %v630 = vadd.f32 %v545, %v629
        %v631 = vpop.f32.mrb[0].mxu0
        %v632 = vadd.f32 %v547, %v631
        %v633 = vpop.f32.mrb[0].mxu0
        %v634 = vadd.f32 %v549, %v633
        %v635 = vpop.f32.mrb[0].mxu0
        %v636 = vadd.f32 %v551, %v635
        %637 = vmatprep.mubr.bf16.mxu0 0
        %638 = vmatmul.mubr.bf16.gmra.mrb[0].mxu0 %v580
        %v639 = vpop.f32.mrb[0].mxu0
        %v640 = vadd.f32 %v555, %v639
        %v641 = vpop.f32.mrb[0].mxu0
        %v642 = vadd.f32 %v557, %v641
        %v643 = vpop.f32.mrb[0].mxu0
        %v644 = vadd.f32 %v559, %v643
        %v645 = vpop.f32.mrb[0].mxu0
        %v646 = vadd.f32 %v561, %v645
        %647 = vmatprep.mubr.bf16.mxu0 0
        %648 = vmatmul.mubr.bf16.gmra.mrb[0].mxu0 %v583
        %v649 = vpop.f32.mrb[0].mxu0
        %v650 = vadd.f32 %v565, %v649
        %v651 = vpop.f32.mrb[0].mxu0
        %v652 = vadd.f32 %v567, %v651
        %v653 = vpop.f32.mrb[0].mxu0
        %v654 = vadd.f32 %v569, %v653
        %v655 = vpop.f32.mrb[0].mxu0
        %v656 = vadd.f32 %v571, %v655
        %657 = vdwg.mxu0
        %v658 = vunpack.c.l.bf16 %v452
        %v659 = vunpack.c.l.bf16 %v453
        %v660 = vunpack.c.l.bf16 %v454
        %v661 = vunpack.c.l.bf16 %v455
        %v662 = vunpack.c.l.bf16 %v456
        %v663 = vunpack.c.l.bf16 %v457
        %v664 = vunpack.c.l.bf16 %v458
        %v665 = vunpack.c.l.bf16 %v459
        %667 = vset.pattern.permute.xlu0 127
        %668 = vperm.xlu0 %667, %v658
        %v669 = vpop.permute.xlu0 %668
        %672 = vset.pattern.permute.xlu0 127
        %673 = vperm.xlu0 %672, %v659
        %v674 = vpop.permute.xlu0 %673
        %677 = vset.pattern.permute.xlu0 127
        %678 = vperm.xlu0 %677, %v660
        %v679 = vpop.permute.xlu0 %678
        %682 = vset.pattern.permute.xlu0 127
        %683 = vperm.xlu0 %682, %v661
        %v684 = vpop.permute.xlu0 %683
        %687 = vset.pattern.permute.xlu0 127
        %688 = vperm.xlu0 %687, %v662
        %v689 = vpop.permute.xlu0 %688
        %692 = vset.pattern.permute.xlu0 127
        %693 = vperm.xlu0 %692, %v663
        %v694 = vpop.permute.xlu0 %693
        %697 = vset.pattern.permute.xlu0 127
        %698 = vperm.xlu0 %697, %v664
        %v699 = vpop.permute.xlu0 %698
        %702 = vset.pattern.permute.xlu0 127
        %703 = vperm.xlu0 %702, %v665
        %v704 = vpop.permute.xlu0 %703
        %v706 = vadd.f32 %v620, %v669
        %v707 = vadd.f32 %v622, %v669
        %v708 = vadd.f32 %v624, %v674
        %v709 = vadd.f32 %v626, %v674
        %v710 = vadd.f32 %v630, %v679
        %v711 = vadd.f32 %v632, %v679
        %v712 = vadd.f32 %v634, %v684
        %v713 = vadd.f32 %v636, %v684
        %v714 = vadd.f32 %v640, %v689
        %v715 = vadd.f32 %v642, %v689
        %v716 = vadd.f32 %v644, %v694
        %v717 = vadd.f32 %v646, %v694
        %v718 = vadd.f32 %v650, %v699
        %v719 = vadd.f32 %v652, %v699
        %v720 = vadd.f32 %v654, %v704
        %v721 = vadd.f32 %v656, %v704
        %v722 = vmul.f32 %v706, %v714
        %v723 = vmul.f32 %v707, %v715
        %v724 = vmul.f32 %v708, %v716
        %v725 = vmul.f32 %v709, %v717
        %v726 = vmul.f32 %v710, %v718
        %v727 = vmul.f32 %v711, %v719
        %v728 = vmul.f32 %v712, %v720
        %v729 = vmul.f32 %v713, %v721
        %v730 = vpack.c.bf16 %v724, %v722
        %v731 = vpack.c.bf16 %v725, %v723
        %v732 = vpack.c.bf16 %v728, %v726
        %v733 = vpack.c.bf16 %v729, %v727
        %v734 = vld [vmem:[#allocation5 + $0x50] sm:$0xf]
        %v735 = vld [vmem:[#allocation5 + $0x54] sm:$0xf]
        %v736 = vld [vmem:[#allocation5 + $0x58] sm:$0xf]
        %v737 = vld [vmem:[#allocation5 + $0x5c] sm:$0xf]
        %v738 = vunpack.c.l.bf16 %v734
        %v739 = vunpack.c.l.bf16 %v735
        %v740 = vunpack.c.l.bf16 %v736
        %v741 = vunpack.c.l.bf16 %v737
        %743 = vset.pattern.permute.xlu0 127
        %744 = vperm.xlu0 %743, %v738
        %v745 = vpop.permute.xlu0 %744
        %748 = vset.pattern.permute.xlu0 127
        %749 = vperm.xlu0 %748, %v739
        %v750 = vpop.permute.xlu0 %749
        %753 = vset.pattern.permute.xlu0 127
        %754 = vperm.xlu0 %753, %v740
        %v755 = vpop.permute.xlu0 %754
        %758 = vset.pattern.permute.xlu0 127
        %759 = vperm.xlu0 %758, %v741
        %v760 = vpop.permute.xlu0 %759
        %v766 = vunpack.c.l.b16 %v734
        %v767 = vunpack.c.l.b16 %v735
        %v768 = vunpack.c.l.b16 %v736
        %v769 = vunpack.c.l.b16 %v737
        %v770 = vpack.c.b16 %v767, %v766
        %v771 = vpack.c.b16 %v769, %v768
        %v773 = vsel %vm354, %v770, 0
        %v776 = vsel %vm354, %v771, 0
        %778 = vmatprep.subr.bf16.mxu0 %v731
        %779 = vmatpush1.bf16.msra.mxu0 %v730
        %780 = vmatprep.subr.bf16.mxu0 %v733
        %781 = vmatpush1.bf16.msra.mxu0 %v732
        %782 = vmatprep.subr.bf16.mxu0 0
        %783 = vmatpush1.bf16.msra.mxu0 0
        %784 = vmatprep.subr.bf16.mxu0 0
        %785 = vmatpush1.bf16.msra.mxu0 0
        %786 = vmatprep.subr.bf16.mxu0 0
        %787 = vmatpush1.bf16.msra.mxu0 0
        %788 = vmatprep.subr.bf16.mxu0 0
        %789 = vmatpush1.bf16.msra.mxu0 0
        %790 = vmatprep.subr.bf16.mxu0 0
        %791 = vmatpush1.bf16.msra.mxu0 0
        %792 = vmatprep.subr.bf16.mxu0 0
        %793 = vmatpush1.bf16.msra.mxu0 0
        %794 = vmatprep.subr.bf16.mxu0 0
        %795 = vmatpush1.bf16.msra.mxu0 0
        %796 = vmatprep.subr.bf16.mxu0 0
        %797 = vmatpush1.bf16.msra.mxu0 0
        %798 = vmatprep.subr.bf16.mxu0 0
        %799 = vmatpush1.bf16.msra.mxu0 0
        %800 = vmatprep.subr.bf16.mxu0 0
        %801 = vmatpush1.bf16.msra.mxu0 0
        %802 = vmatprep.subr.bf16.mxu0 0
        %803 = vmatpush1.bf16.msra.mxu0 0
        %804 = vmatprep.subr.bf16.mxu0 0
        %805 = vmatpush1.bf16.msra.mxu0 0
        %806 = vmatprep.subr.bf16.mxu0 0
        %807 = vmatpush1.bf16.msra.mxu0 0
        %808 = vmatprep.subr.bf16.mxu0 0
        %809 = vmatpush1.bf16.msra.mxu0 0
        %810 = vmatprep.mubr.bf16.mxu0 0
        %811 = vmatmul.mubr.bf16.gmra.mrb[0].mxu0 %v773
        %v812 = vpop.f32.mrb[0].mxu0
        %v813 = vadd.f32 %v745, %v812
        %v814 = vpop.f32.mrb[0].mxu0
        %v815 = vadd.f32 %v745, %v814
        %v816 = vpop.f32.mrb[0].mxu0
        %v817 = vadd.f32 %v750, %v816
        %v818 = vpop.f32.mrb[0].mxu0
        %v819 = vadd.f32 %v750, %v818
        %820 = vmatprep.mubr.bf16.mxu0 0
        %821 = vmatmul.mubr.bf16.gmra.mrb[0].mxu0 %v776
        %v822 = vpop.f32.mrb[0].mxu0
        %v823 = vadd.f32 %v755, %v822
        %v824 = vpop.f32.mrb[0].mxu0
        %v825 = vadd.f32 %v755, %v824
        %v826 = vpop.f32.mrb[0].mxu0
        %v827 = vadd.f32 %v760, %v826
        %v828 = vpop.f32.mrb[0].mxu0
        %v829 = vadd.f32 %v760, %v828
        %830 = vdwg.mxu0
        %v831 = vld [vmem:[#allocation5 + $0x60] sm:$0xf]
        %v832 = vld [vmem:[#allocation5 + $0x64] sm:$0xf]
        %v833 = vld [vmem:[#allocation5 + $0x68] sm:$0xf]
        %v834 = vld [vmem:[#allocation5 + $0x6c] sm:$0xf]
        %v835 = vunpack.c.l.bf16 %v831
        %v836 = vunpack.c.l.bf16 %v832
        %v837 = vunpack.c.l.bf16 %v833
        %v838 = vunpack.c.l.bf16 %v834
        %840 = vset.pattern.permute.xlu0 0
        %841 = vperm.xlu0 %840, %v835
        %v842 = vpop.permute.xlu0 %841
        %845 = vset.pattern.permute.xlu0 0
        %846 = vperm.xlu0 %845, %v836
        %v847 = vpop.permute.xlu0 %846
        %850 = vset.pattern.permute.xlu0 0
        %851 = vperm.xlu0 %850, %v837
        %v852 = vpop.permute.xlu0 %851
        %855 = vset.pattern.permute.xlu0 0
        %856 = vperm.xlu0 %855, %v838
        %v857 = vpop.permute.xlu0 %856
        %v859 = vmul.f32 %v813, %v842
        %v860 = vmul.f32 %v815, %v842
        %v861 = vmul.f32 %v817, %v847
        %v862 = vmul.f32 %v819, %v847
        %v863 = vmul.f32 %v823, %v852
        %v864 = vmul.f32 %v825, %v852
        %v865 = vmul.f32 %v827, %v857
        %v866 = vmul.f32 %v829, %v857
        %v867 = vadd.f32 %v859, %v861
        %v868 = vadd.f32 %v867, %v863
        %v869 = vadd.f32 %v868, %v865
        %v870 = vrot.slane %v869, 4
        %v871 = vadd.f32 %v869, %v870
        %v872 = vrot.slane %v871, 2
        %v873 = vadd.f32 %v871, %v872
        %v874 = vrot.slane %v873, 1
        %v875 = vadd.f32 %v873, %v874
        %v876 = vadd.f32 %v860, %v862
        %v877 = vadd.f32 %v876, %v864
        %v878 = vadd.f32 %v877, %v866
        %v879 = vrot.slane %v878, 4
        %v880 = vadd.f32 %v878, %v879
        %v881 = vrot.slane %v880, 2
        %v882 = vadd.f32 %v880, %v881
        %v883 = vrot.slane %v882, 1
        %v884 = vadd.f32 %v882, %v883
        %v887 = vcombine.low %v875, %v884
        %v889 = vunpack.c.l.s4 1966171168
        %v890 = vunpack.c.0.s8 %v889
        %v891 = vlaneseq
        %v892 = vshrl.u32 %v891, 7
        %v893 = vsub.s32 %v890, %v892
        %v894 = vrot.slane %v887, %v893
        %v896 = vunpack.c.l.s4 1966171168
        %v897 = vunpack.c.0.s8 %v896
        %v898 = vlaneseq
        %v899 = vshrl.u32 %v898, 7
        %v900 = vsub.s32 %v897, %v899
        %v901 = vrot.slane %v894, %v900
        %v903 = vlaneseq
        %vm904 = vcmp.ge.s32.totalorder %v903, 0
        %vm905 = vcmp.lt.s32.totalorder %v903, 256
        %vm906 = vmand %vm904, %vm905
        %907 = vst.msk [vmem:[%s176] sm:$0x3] %vm906, %v901
        %s908 = sand.u32 %s75, 1
        %s909 = scalar_lea.sflag [#allocation4], %s908
        %s910 = sand.u32 %s75, 1
        %s911 = smul.addr %s910, 2
        %s912 = scalar_lea.vmem [#allocation7], %s911
        // Predicated region
        $region37: #{tpu_custom_call.1} parent=27 // pred_check
          %p913 = pneg %p85
        $region38: #{tpu_custom_call.1} parent=27 // pred_check_branch
          %915 = sbr.rel (%p913) target = $region40
        $region39: #{tpu_custom_call.1} parent=27 // pred_region
          %s916 = smul.u32 2, %s20
          %s918 = ssub.s32 32, 32
          %919 = vsyncadd %s909, %s918
          %s920 = smul.addr %s916, 16
          %s921 = scalar_lea.hbm %s2, %s920
          %s923 = sshll.u32 %s912, 4
          %s924 = int_to_ptr.vmem [resolvable:$true] %s923
          %926 = dma.vmem_to_hbm [thread:$0]  %s924, 32, %s921, %s909
        $region40: #{tpu_custom_call.1} parent=27 // pred_fallthru
          _
      $region28: #{tpu_custom_call.1} parent=5 // pred_fallthru
        _
      %p927 = scmp.le.s32.totalorder 2, %s15
      // Predicated region
      $region41: #{tpu_custom_call.1} parent=5 // pred_check
        %p928 = pneg %p927
      $region42: #{tpu_custom_call.1} parent=5 // pred_check_branch
        %930 = sbr.rel (%p928) target = $region44
      $region43: #{tpu_custom_call.1} parent=5 // pred_region
        %s931 = ssub.s32 %s15, 2
        // Predicated region
        $region45: #{tpu_custom_call.1} parent=43 // pred_check
          %p932 = pneg %p91
        $region46: #{tpu_custom_call.1} parent=43 // pred_check_branch
          %934 = sbr.rel (%p932) target = $region48
        $region47: #{tpu_custom_call.1} parent=43 // pred_region
          %s935 = sand.u32 %s76, 1
          %s936 = scalar_lea.sflag [#allocation4], %s935
          %s937 = sand.u32 %s76, 1
          %s938 = smul.addr %s937, 2
          %s939 = scalar_lea.vmem [#allocation7], %s938
          %940 = dma.done %s936, 32
        $region48: #{tpu_custom_call.1} parent=43 // pred_fallthru
          _
      $region44: #{tpu_custom_call.1} parent=5 // pred_fallthru
        _
    $region6: #{tpu_custom_call.1} parent=1 // loop_footer
      %s19 = sadd.s32 1, %s15
    $region7: #{tpu_custom_call.1} parent=1 // loop_footer_branch
      %14 = sbr.rel target = $region3
    $region8: #{tpu_custom_call.1} parent=1 // loop_exit
      _
    %941 = vsyncpa [#allocation3], 1
    %s942 = scalar_lea.sflag [#allocation3], 1
    %943 = vsyncpa %s942, 1
    %944 = vsyncpa [#allocation6], 1
    %945 = vsyncpa [#allocation4], 1
    %s946 = scalar_lea.sflag [#allocation4], 1
    %947 = vsyncpa %s946, 1

</llo_original>
